<compile_context>
chip_gen: v7x
topology: tpu7x:2x2x1
jax: 0.10.0
libtpu: 0.0.40
codegen_flags: <defaults>
</compile_context>

<pallas_src>
import functools

import jax
import jax.numpy as jnp
from jax.experimental import pallas as pl
from jax.experimental.pallas import tpu as pltpu


def _triplet_loss_kernel(a_ref, p_ref, n_ref, loss_ref, *, margin):
    # Upcast first (see header note), then subtract / square / reduce in f32.
    a = a_ref[...].astype(jnp.float32)
    p = p_ref[...].astype(jnp.float32)
    n = n_ref[...].astype(jnp.float32)

    dp = a - p
    dn = a - n

    # Per-row L2 distances; keep (tile_b, 1) shapes (lane-axis reduce on XLU).
    pos_dist = jnp.sqrt(jnp.sum(dp * dp, axis=1, keepdims=True))
    neg_dist = jnp.sqrt(jnp.sum(dn * dn, axis=1, keepdims=True))

    loss_ref[...] = jnp.maximum(pos_dist - neg_dist + margin, 0.0)


def _choose_tile_b(B, D, itemsize):
    # Sublane packing for this dtype: 8 rows (f32), 16 (bf16), 32 (int8/fp8).
    packing = max(8, 32 // itemsize)

    # Per-row VMEM footprint:
    #   3 inputs x 2 pipeline buffers x D x itemsize      (streamed blocks)
    # + ~5 x D x 4 B of f32 temporaries (a/p/n upcasts + dp/dn)
    # + output block (2 buffers x 4 B, negligible)
    bytes_per_row = 6 * D * itemsize + 5 * D * 4 + 16
    budget_bytes = 20 * 1024 * 1024      # leaves headroom under the 32 MiB
    tile = budget_bytes // bytes_per_row  # scoped limit on every generation
    tile = max(packing, (int(tile) // packing) * packing)

    b_pad = ((B + packing - 1) // packing) * packing
    return min(tile, b_pad)


def triplet_loss(anchor, positive, negative, margin=1.0, tile_b=None):
    """Pallas TPU implementation of TripletLoss.forward.

    anchor, positive, negative: (B, D) arrays. Returns a scalar float32.
    """
    assert anchor.shape == positive.shape == negative.shape
    assert anchor.ndim == 2
    B, D = anchor.shape
    itemsize = jnp.dtype(anchor.dtype).itemsize
    packing = max(8, 32 // itemsize)
    if tile_b is None:
        tile_b = _choose_tile_b(B, D, itemsize)
    tile_b = max(packing, (int(tile_b) // packing) * packing)
    num_tiles = pl.cdiv(B, tile_b)

    kernel = functools.partial(_triplet_loss_kernel, margin=float(margin))

    per_row_loss = pl.pallas_call(
        kernel,
        out_shape=jax.ShapeDtypeStruct((B, 1), jnp.float32),
        grid_spec=pltpu.PrefetchScalarGridSpec(
            num_scalar_prefetch=0,
            grid=(num_tiles,),
            in_specs=[
                pl.BlockSpec((tile_b, D), lambda i: (i, 0)),
                pl.BlockSpec((tile_b, D), lambda i: (i, 0)),
                pl.BlockSpec((tile_b, D), lambda i: (i, 0)),
            ],
            out_specs=pl.BlockSpec((tile_b, 1), lambda i: (i, 0)),
        ),
        compiler_params=pltpu.CompilerParams(
            # Each grid step is independent -> shard across TCs on v7x.
            dimension_semantics=("parallel",),
            vmem_limit_bytes=32 * 1024 * 1024,
        ),
        cost_estimate=pl.CostEstimate(
            flops=6 * B * D,
            transcendentals=2 * B,
            bytes_accessed=3 * B * D * itemsize + 4 * B,
        ),
    )(anchor, positive, negative)

    # Tiny final reduction (B scalars) done in XLA, as recommended, so the
    # grid axis stays fully parallel.
    return jnp.mean(per_row_loss)


def triplet_loss_ref(anchor, positive, negative, margin=1.0):
    pos = jnp.linalg.norm(anchor - positive, axis=1)
    neg = jnp.linalg.norm(anchor - negative, axis=1)
    return jnp.mean(jnp.maximum(pos - neg + margin, 0.0))


if __name__ == "__main__":
    # Small shapes; B deliberately NOT a multiple of the forced tile_b so the
    # multi-step parallel grid and the partial last tile both get exercised.
    B, D = 20, 256
    key = jax.random.PRNGKey(0)
    ka, kp, kn = jax.random.split(key, 3)
    anchor = jax.random.normal(ka, (B, D), dtype=jnp.float32)
    positive = jax.random.normal(kp, (B, D), dtype=jnp.float32)
    negative = jax.random.normal(kn, (B, D), dtype=jnp.float32)

    ref = triplet_loss_ref(anchor, positive, negative, margin=1.0)

    # Multi-tile path (grid of 3, last tile partial).
    out_small_tiles = triplet_loss(anchor, positive, negative, margin=1.0,
                                   tile_b=8)
    out_small_tiles = jax.block_until_ready(out_small_tiles)
    assert jnp.allclose(out_small_tiles, ref, rtol=1e-5, atol=1e-5), (
        out_small_tiles, ref)

    # Auto-tiled path (single tile covering the whole padded batch).
    out_auto = triplet_loss(anchor, positive, negative, margin=1.0)
    out_auto = jax.block_until_ready(out_auto)
    assert jnp.allclose(out_auto, ref, rtol=1e-5, atol=1e-5), (out_auto, ref)

    print("KERNEL_OK")
</pallas_src>

<mosaic_0001>
module attributes {stable_mosaic.version = 11 : i64} {
  func.func @_triplet_loss_kernel(%arg0: i32, %arg1: memref<8x256xf32, #tpu.memory_space<vmem>>, %arg2: memref<8x256xf32, #tpu.memory_space<vmem>>, %arg3: memref<8x256xf32, #tpu.memory_space<vmem>>, %arg4: memref<8x1xf32, #tpu.memory_space<vmem>>) attributes {dimension_semantics = [#tpu.dimension_semantics<parallel>], iteration_bounds = array<i64: 3>, scalar_prefetch = 0 : i64, scratch_operands = 0 : i64, tpu.core_type = #tpu.core_type<tc>, window_params = [{transform_indices = @transform_0, window_bounds = array<i64: 8, 256>}, {transform_indices = @transform_1, window_bounds = array<i64: 8, 256>}, {transform_indices = @transform_2, window_bounds = array<i64: 8, 256>}, {transform_indices = @transform_3, window_bounds = array<i64: 8, 1>}]} {
    %c0 = arith.constant 0 : index
    %c0_0 = arith.constant 0 : index
    %0 = vector.load %arg1[%c0, %c0_0] : memref<8x256xf32, #tpu.memory_space<vmem>>, vector<8x256xf32>
    %c0_1 = arith.constant 0 : index
    %c0_2 = arith.constant 0 : index
    %1 = vector.load %arg2[%c0_1, %c0_2] : memref<8x256xf32, #tpu.memory_space<vmem>>, vector<8x256xf32>
    %c0_3 = arith.constant 0 : index
    %c0_4 = arith.constant 0 : index
    %2 = vector.load %arg3[%c0_3, %c0_4] : memref<8x256xf32, #tpu.memory_space<vmem>>, vector<8x256xf32>
    %3 = arith.subf %0, %1 : vector<8x256xf32>
    %4 = arith.subf %0, %2 : vector<8x256xf32>
    %5 = arith.mulf %3, %3 : vector<8x256xf32>
    %cst = arith.constant dense<0.000000e+00> : vector<8xf32>
    %6 = vector.multi_reduction <add>, %5, %cst [1] : vector<8x256xf32> to vector<8xf32>
    %7 = vector.shape_cast %6 : vector<8xf32> to vector<8x1xf32>
    %8 = math.sqrt %7 : vector<8x1xf32>
    %9 = arith.mulf %4, %4 : vector<8x256xf32>
    %cst_5 = arith.constant dense<0.000000e+00> : vector<8xf32>
    %10 = vector.multi_reduction <add>, %9, %cst_5 [1] : vector<8x256xf32> to vector<8xf32>
    %11 = vector.shape_cast %10 : vector<8xf32> to vector<8x1xf32>
    %12 = math.sqrt %11 : vector<8x1xf32>
    %13 = arith.subf %8, %12 : vector<8x1xf32>
    %cst_6 = arith.constant 1.000000e+00 : f32
    %14 = vector.broadcast %cst_6 : f32 to vector<8x1xf32>
    %15 = arith.addf %13, %14 : vector<8x1xf32>
    %cst_7 = arith.constant 0.000000e+00 : f32
    %16 = vector.broadcast %cst_7 : f32 to vector<8x1xf32>
    %17 = arith.maximumf %15, %16 : vector<8x1xf32>
    %c0_8 = arith.constant 0 : index
    %c0_9 = arith.constant 0 : index
    %18 = vector.load %arg4[%c0_8, %c0_9] : memref<8x1xf32, #tpu.memory_space<vmem>>, vector<8x1xf32>
    tpu.vector_store %arg4[%c0_8, %c0_9], %17 {strides = array<i32>} : memref<8x1xf32, #tpu.memory_space<vmem>>, vector<8x1xf32>,
    return
  }
  func.func @transform_0(%arg0: i32) -> (i32, i32) {
    %c0_i32 = arith.constant 0 : i32
    %c0_i32_0 = arith.constant 0 : i32
    return %arg0, %c0_i32 : i32, i32
  }
  func.func @transform_1(%arg0: i32) -> (i32, i32) {
    %c0_i32 = arith.constant 0 : i32
    %c0_i32_0 = arith.constant 0 : i32
    return %arg0, %c0_i32 : i32, i32
  }
  func.func @transform_2(%arg0: i32) -> (i32, i32) {
    %c0_i32 = arith.constant 0 : i32
    %c0_i32_0 = arith.constant 0 : i32
    return %arg0, %c0_i32 : i32, i32
  }
  func.func @transform_3(%arg0: i32) -> (i32, i32) {
    %c0_i32 = arith.constant 0 : i32
    %c0_i32_0 = arith.constant 0 : i32
    return %arg0, %c0_i32 : i32, i32
  }
}

</mosaic_0001>

<llo_original>
// kernel: tpu_custom_call.1
$region0: #{tpu_custom_call.1}
  #allocation0 [shape = 'u32[]', space=smem, size = 0x4, offset = 0x4, fixed_abs, tag = 'smem constant byte address 0x4 - core index']
  #allocation1 [shape = 'u32[144,128]{1,0:T(1,128)}', space=vmem, size = 0x12000, scoped, tag = 'internal scratch']
  %s0 = inlined_call_operand.hbm [shape: f32[20,256], index: 0, kind: input, shape index: {}]
  %s1 = inlined_call_operand.hbm [shape: f32[20,256], index: 1, kind: input, shape index: {}]
  %s2 = inlined_call_operand.hbm [shape: f32[20,256], index: 2, kind: input, shape index: {}]
  %s3 = inlined_call_operand.vmem [shape: f32[20,1], index: 3, kind: output, shape index: {}]
  %s4 = sld [smem:[#allocation0]]
  $region57: #{tpu_custom_call.1} parent=0
    _
  %s6 = ssub.s32 1, %s4
  %s7 = scalar_select 0, %s6, %s4
  $region1: #{tpu_custom_call.1} parent=0
    #allocation2 [shape = 'u8[16384]{0}', space=vmem, size = 0x4000, scoped, tag = 'input window, operand 0']
    #allocation3 [shape = 's32[2]{0}', space=sflag, size = 0x8, scoped, tag = 'scoped memory for tpu_custom_call.1']
    #allocation4 [shape = 'u8[16384]{0}', space=vmem, size = 0x4000, scoped, tag = 'input window, operand 1']
    #allocation5 [shape = 's32[2]{0}', space=sflag, size = 0x8, scoped, tag = 'scoped memory for tpu_custom_call.1']
    #allocation6 [shape = 'u8[16384]{0}', space=vmem, size = 0x4000, scoped, tag = 'input window, operand 2']
    %8 = vsyncpa [#allocation3], 0
    %s9 = scalar_lea.sflag [#allocation3], 1
    %10 = vsyncpa %s9, 0
    %11 = vsyncpa [#allocation5], 0
    %s12 = scalar_lea.sflag [#allocation5], 1
    %13 = vsyncpa %s12, 0
    loop: start=0, step=1, limit=5
    $region2: #{tpu_custom_call.1} parent=1 // loop_pre_header
      _
    $region3: #{tpu_custom_call.1} parent=1 // loop_header
      %s15 = sphi 0, %s19
      %p16 = scmp.ge.s32.totalorder %s15, 5
      %s25 = sphi 0, %s27
      %s28 = sphi 0, %s25
      %s29 = sphi 0, %s28
      %s45 = sphi 0, %s29
      %s51 = sphi 0, %s53
      %s54 = sphi 0, %s51
      %s55 = sphi 0, %s54
      %s71 = sphi 0, %s55
      %s77 = sphi 0, %s79
      %s80 = sphi 0, %s77
      %s81 = sphi 0, %s80
      %s97 = sphi 0, %s81
      %s103 = sphi 0, %s105
      %s106 = sphi 0, %s103
      %s107 = sphi 0, %s106
      %s123 = sphi 0, %s107
    $region4: #{tpu_custom_call.1} parent=1 // loop_header_branch
      %18 = sbr.rel (%p16) target = $region8
    $region5: #{tpu_custom_call.1} parent=1 // loop_body
      %s20 = ssub.s32 %s15, 1
      %s21 = ssub.s32 %s15, 2
      %s22 = sadd.s32 %s15, 1
      %s23 = ssub.s32 %s15, %s22
      %p24 = scmp.eq.s32.totalorder %s23, 0
      %s26 = sadd.s32 %s25, 1
      %s27 = scalar_select %p24, %s25, %s26
      %p30 = pneg %p24
      %p31 = scmp.eq.s32.totalorder %s15, 2
      %p32 = por %p30, %p31
      %p33 = scmp.ne.s32.totalorder %s25, %s28
      %p34 = scmp.eq.s32.totalorder %s15, 0
      %p35 = por %p33, %p34
      %p36 = scmp.ne.s32.totalorder %s25, %s28
      %p37 = scmp.eq.s32.totalorder %s20, 2
      %p38 = por %p36, %p37
      %p39 = scmp.ne.s32.totalorder %s28, %s29
      %p40 = scmp.eq.s32.totalorder %s20, 0
      %p41 = por %p39, %p40
      %p42 = scmp.ne.s32.totalorder %s28, %s29
      %p43 = scmp.eq.s32.totalorder %s21, 2
      %p44 = por %p42, %p43
      %p46 = scmp.ne.s32.totalorder %s29, %s45
      %p47 = scmp.eq.s32.totalorder %s21, 0
      %p48 = por %p46, %p47
      %s49 = ssub.s32 %s15, %s22
      %p50 = scmp.eq.s32.totalorder %s49, 0
      %s52 = sadd.s32 %s51, 1
      %s53 = scalar_select %p50, %s51, %s52
      %p56 = pneg %p50
      %p57 = scmp.eq.s32.totalorder %s15, 2
      %p58 = por %p56, %p57
      %p59 = scmp.ne.s32.totalorder %s51, %s54
      %p60 = scmp.eq.s32.totalorder %s15, 0
      %p61 = por %p59, %p60
      %p62 = scmp.ne.s32.totalorder %s51, %s54
      %p63 = scmp.eq.s32.totalorder %s20, 2
      %p64 = por %p62, %p63
      %p65 = scmp.ne.s32.totalorder %s54, %s55
      %p66 = scmp.eq.s32.totalorder %s20, 0
      %p67 = por %p65, %p66
      %p68 = scmp.ne.s32.totalorder %s54, %s55
      %p69 = scmp.eq.s32.totalorder %s21, 2
      %p70 = por %p68, %p69
      %p72 = scmp.ne.s32.totalorder %s55, %s71
      %p73 = scmp.eq.s32.totalorder %s21, 0
      %p74 = por %p72, %p73
      %s75 = ssub.s32 %s15, %s22
      %p76 = scmp.eq.s32.totalorder %s75, 0
      %s78 = sadd.s32 %s77, 1
      %s79 = scalar_select %p76, %s77, %s78
      %p82 = pneg %p76
      %p83 = scmp.eq.s32.totalorder %s15, 2
      %p84 = por %p82, %p83
      %p85 = scmp.ne.s32.totalorder %s77, %s80
      %p86 = scmp.eq.s32.totalorder %s15, 0
      %p87 = por %p85, %p86
      %p88 = scmp.ne.s32.totalorder %s77, %s80
      %p89 = scmp.eq.s32.totalorder %s20, 2
      %p90 = por %p88, %p89
      %p91 = scmp.ne.s32.totalorder %s80, %s81
      %p92 = scmp.eq.s32.totalorder %s20, 0
      %p93 = por %p91, %p92
      %p94 = scmp.ne.s32.totalorder %s80, %s81
      %p95 = scmp.eq.s32.totalorder %s21, 2
      %p96 = por %p94, %p95
      %p98 = scmp.ne.s32.totalorder %s81, %s97
      %p99 = scmp.eq.s32.totalorder %s21, 0
      %p100 = por %p98, %p99
      %s101 = ssub.s32 %s15, %s22
      %p102 = scmp.eq.s32.totalorder %s101, 0
      %s104 = sadd.s32 %s103, 1
      %s105 = scalar_select %p102, %s103, %s104
      %p108 = pneg %p102
      %p109 = scmp.eq.s32.totalorder %s15, 2
      %p110 = por %p108, %p109
      %p111 = scmp.ne.s32.totalorder %s103, %s106
      %p112 = scmp.eq.s32.totalorder %s15, 0
      %p113 = por %p111, %p112
      %p114 = scmp.ne.s32.totalorder %s103, %s106
      %p115 = scmp.eq.s32.totalorder %s20, 2
      %p116 = por %p114, %p115
      %p117 = scmp.ne.s32.totalorder %s106, %s107
      %p118 = scmp.eq.s32.totalorder %s20, 0
      %p119 = por %p117, %p118
      %p120 = scmp.ne.s32.totalorder %s106, %s107
      %p121 = scmp.eq.s32.totalorder %s21, 2
      %p122 = por %p120, %p121
      %p124 = scmp.ne.s32.totalorder %s107, %s123
      %p125 = scmp.eq.s32.totalorder %s21, 0
      %p126 = por %p124, %p125
      %p127 = scmp.le.s32.totalorder 1, %s15
      %p128 = scmp.lt.s32.totalorder %s15, 4
      %p129 = pnand %p127, %p128
      %p130 = pneg %p129
      // Predicated region
      $region9: #{tpu_custom_call.1} parent=5 // pred_check
        _
      $region10: #{tpu_custom_call.1} parent=5 // pred_check_branch
        %132 = sbr.rel (%p129) target = $region12
      $region11: #{tpu_custom_call.1} parent=5 // pred_region
        %s133 = ssub.s32 %s15, 1
      $region12: #{tpu_custom_call.1} parent=5 // pred_fallthru
        _
      %p134 = scmp.lt.s32.totalorder %s15, 3
      // Predicated region
      $region13: #{tpu_custom_call.1} parent=5 // pred_check
        %p135 = pneg %p134
      $region14: #{tpu_custom_call.1} parent=5 // pred_check_branch
        %137 = sbr.rel (%p135) target = $region16
      $region15: #{tpu_custom_call.1} parent=5 // pred_region
        // Predicated region
        $region17: #{tpu_custom_call.1} parent=15 // pred_check
          %p138 = pneg %p35
        $region18: #{tpu_custom_call.1} parent=15 // pred_check_branch
          %140 = sbr.rel (%p138) target = $region20
        $region19: #{tpu_custom_call.1} parent=15 // pred_region
          %s141 = sand.u32 %s25, 1
          %s142 = scalar_lea.sflag [#allocation3], %s141
          %s143 = sand.u32 %s25, 1
          %s144 = smul.addr %s143, 16
          %s145 = scalar_lea.vmem [#allocation2], %s144
          %s147 = ssub.s32 256, 256
          %148 = vsyncadd %s142, %s147
          %s149 = smul.addr %s15, 2
          %s150 = smul.addr %s149, 128
          %s151 = scalar_lea.hbm %s0, %s150
          %s153 = sshll.u32 %s145, 4
          %s154 = int_to_ptr.vmem [resolvable:$true] %s153
          %156 = dma.hbm_to_vmem [thread:$0]  %s151, 256, %s154, %s142
        $region20: #{tpu_custom_call.1} parent=15 // pred_fallthru
          _
        // Predicated region
        $region21: #{tpu_custom_call.1} parent=15 // pred_check
          %p157 = pneg %p61
        $region22: #{tpu_custom_call.1} parent=15 // pred_check_branch
          %159 = sbr.rel (%p157) target = $region24
        $region23: #{tpu_custom_call.1} parent=15 // pred_region
          %s160 = sand.u32 %s15, 1
          %s161 = scalar_lea.sflag [#allocation5], %s160
          %s162 = sand.u32 %s51, 1
          %s163 = smul.addr %s162, 16
          %s164 = scalar_lea.vmem [#allocation4], %s163
          %s166 = ssub.s32 256, 256
          %167 = vsyncadd %s161, %s166
          %s168 = smul.addr %s15, 2
          %s169 = smul.addr %s168, 128
          %s170 = scalar_lea.hbm %s1, %s169
          %s172 = sshll.u32 %s164, 4
          %s173 = int_to_ptr.vmem [resolvable:$true] %s172
          %175 = dma.hbm_to_vmem [thread:$0]  %s170, 256, %s173, %s161
        $region24: #{tpu_custom_call.1} parent=15 // pred_fallthru
          _
        // Predicated region
        $region25: #{tpu_custom_call.1} parent=15 // pred_check
          %p176 = pneg %p87
        $region26: #{tpu_custom_call.1} parent=15 // pred_check_branch
          %178 = sbr.rel (%p176) target = $region28
        $region27: #{tpu_custom_call.1} parent=15 // pred_region
          %s179 = sand.u32 %s15, 1
          %s180 = scalar_lea.sflag [#allocation5], %s179
          %s181 = sand.u32 %s77, 1
          %s182 = smul.addr %s181, 16
          %s183 = scalar_lea.vmem [#allocation6], %s182
          %s185 = ssub.s32 256, 256
          %186 = vsyncadd %s180, %s185
          %s187 = smul.addr %s15, 2
          %s188 = smul.addr %s187, 128
          %s189 = scalar_lea.hbm %s2, %s188
          %s191 = sshll.u32 %s183, 4
          %s192 = int_to_ptr.vmem [resolvable:$true] %s191
          %194 = dma.hbm_to_vmem [thread:$0]  %s189, 256, %s192, %s180
        $region28: #{tpu_custom_call.1} parent=15 // pred_fallthru
          _
      $region16: #{tpu_custom_call.1} parent=5 // pred_fallthru
        _
      %p195 = scmp.le.s32.totalorder 1, %s15
      %p196 = scmp.lt.s32.totalorder %s15, 4
      %p197 = pnand %p195, %p196
      %p198 = pneg %p197
      // Predicated region
      $region29: #{tpu_custom_call.1} parent=5 // pred_check
        _
      $region30: #{tpu_custom_call.1} parent=5 // pred_check_branch
        %200 = sbr.rel (%p197) target = $region32
      $region31: #{tpu_custom_call.1} parent=5 // pred_region
        %s201 = ssub.s32 %s15, 1
        %s202 = sand.u32 %s28, 1
        %s203 = scalar_lea.sflag [#allocation3], %s202
        %s204 = sand.u32 %s28, 1
        %s205 = smul.addr %s204, 16
        %s206 = scalar_lea.vmem [#allocation2], %s205
        // Predicated region
        $region33: #{tpu_custom_call.1} parent=31 // pred_check
          %p207 = pneg %p41
        $region34: #{tpu_custom_call.1} parent=31 // pred_check_branch
          %209 = sbr.rel (%p207) target = $region36
        $region35: #{tpu_custom_call.1} parent=31 // pred_region
          %210 = dma.done %s203, 256
        $region36: #{tpu_custom_call.1} parent=31 // pred_fallthru
          _
        %s211 = sand.u32 %s20, 1
        %s212 = scalar_lea.sflag [#allocation5], %s211
        %s213 = sand.u32 %s54, 1
        %s214 = smul.addr %s213, 16
        %s215 = scalar_lea.vmem [#allocation4], %s214
        // Predicated region
        $region37: #{tpu_custom_call.1} parent=31 // pred_check
          %p216 = pneg %p67
        $region38: #{tpu_custom_call.1} parent=31 // pred_check_branch
          %218 = sbr.rel (%p216) target = $region40
        $region39: #{tpu_custom_call.1} parent=31 // pred_region
          %219 = dma.done %s212, 256
        $region40: #{tpu_custom_call.1} parent=31 // pred_fallthru
          _
        %s220 = sand.u32 %s20, 1
        %s221 = scalar_lea.sflag [#allocation5], %s220
        %s222 = sand.u32 %s80, 1
        %s223 = smul.addr %s222, 16
        %s224 = scalar_lea.vmem [#allocation6], %s223
        // Predicated region
        $region41: #{tpu_custom_call.1} parent=31 // pred_check
          %p225 = pneg %p93
        $region42: #{tpu_custom_call.1} parent=31 // pred_check_branch
          %227 = sbr.rel (%p225) target = $region44
        $region43: #{tpu_custom_call.1} parent=31 // pred_region
          %228 = dma.done %s221, 256
        $region44: #{tpu_custom_call.1} parent=31 // pred_fallthru
          _
        %s229 = sand.u32 %s28, 1
        %s230 = scalar_lea.sflag [#allocation3], %s229
        %s231 = sand.u32 %s28, 1
        %s232 = smul.addr %s231, 16
        %s233 = scalar_lea.vmem [#allocation2], %s232
        %p234 = pneg %p41
        %p235 = pneg %p38
        %s236 = sand.u32 %s20, 1
        %s237 = scalar_lea.sflag [#allocation5], %s236
        %s238 = sand.u32 %s54, 1
        %s239 = smul.addr %s238, 16
        %s240 = scalar_lea.vmem [#allocation4], %s239
        %p241 = pneg %p67
        %p242 = pneg %p64
        %s243 = sand.u32 %s20, 1
        %s244 = scalar_lea.sflag [#allocation5], %s243
        %s245 = sand.u32 %s80, 1
        %s246 = smul.addr %s245, 16
        %s247 = scalar_lea.vmem [#allocation6], %s246
        %p248 = pneg %p93
        %p249 = pneg %p90
        %p250 = pneg %p119
        %p251 = pneg %p116
        %p252 = scmp.lt.s32.totalorder %s20, 2
        %s253 = scalar_select %p252, %s20, 2
        %s254 = smul.addr %s253, 8
        %s255 = scalar_lea.vmem %s3, %s254
        %p256 = scmp.lt.s32.totalorder %s20, 2
        %s257 = scalar_select %p256, %s20, 2
        %s258 = smul.addr %s257, 8
        %s259 = scalar_lea.vmem %s3, %s258
        %v260 = vld [vmem:[%s206] sm:$0xff]
        %v261 = vld [vmem:[%s206 + $0x8] sm:$0xff]
        %v262 = vld [vmem:[%s215] sm:$0xff]
        %v263 = vld [vmem:[%s215 + $0x8] sm:$0xff]
        %v264 = vld [vmem:[%s224] sm:$0xff]
        %v265 = vld [vmem:[%s224 + $0x8] sm:$0xff]
        %v266 = vsub.f32 %v260, %v262
        %v267 = vsub.f32 %v261, %v263
        %v268 = vsub.f32 %v260, %v264
        %v269 = vsub.f32 %v261, %v265
        %v270 = vmul.f32 %v266, %v266
        %v271 = vmul.f32 %v267, %v267
        %v272 = vadd.f32 %v270, %v271
        %273 = vadd.xlane.f32.xlu0 %v272
        %v274 = vpop.xlane.xlu0 %273
        %v275 = vrsqrt.pop %v274
        %v276 = vmul.f32 %v274, %v275
        %vm277 = vcmp.eq.f32.partialorder %v274, inf
        %v278 = vsel %vm277, %v274, %v276
        %vm279 = vcmp.eq.f32.partialorder %v274, 0.0
        %v280 = vand.u32 %v274, 2147483648
        %v281 = vsel %vm279, %v280, %v278
        %v282 = vmul.f32 %v268, %v268
        %v283 = vmul.f32 %v269, %v269
        %v284 = vadd.f32 %v282, %v283
        %285 = vadd.xlane.f32.xlu0 %v284
        %v286 = vpop.xlane.xlu0 %285
        %v287 = vrsqrt.pop %v286
        %v288 = vmul.f32 %v286, %v287
        %vm289 = vcmp.eq.f32.partialorder %v286, inf
        %v290 = vsel %vm289, %v286, %v288
        %vm291 = vcmp.eq.f32.partialorder %v286, 0.0
        %v292 = vand.u32 %v286, 2147483648
        %v293 = vsel %vm291, %v292, %v290
        %v294 = vsub.f32 %v281, %v293
        %v295 = vadd.f32 %v294, 1.0
        %v296 = vmax.f32 %v295, 0.0
        %vm297 = vcmask 7168
        %298 = vst.msk [vmem:[%s259] sm:$0xff] %vm297, %v296
        %p299 = scmp.lt.s32.totalorder %s20, 2
        %s300 = scalar_select %p299, %s20, 2
        %s301 = smul.addr %s300, 8
        %s302 = scalar_lea.vmem %s3, %s301
        // Predicated region
        $region45: #{tpu_custom_call.1} parent=31 // pred_check
          %p303 = pneg %p116
        $region46: #{tpu_custom_call.1} parent=31 // pred_check_branch
          %305 = sbr.rel (%p303) target = $region48
        $region47: #{tpu_custom_call.1} parent=31 // pred_region
          _
        $region48: #{tpu_custom_call.1} parent=31 // pred_fallthru
          _
      $region32: #{tpu_custom_call.1} parent=5 // pred_fallthru
        _
      %p306 = scmp.le.s32.totalorder 2, %s15
      // Predicated region
      $region49: #{tpu_custom_call.1} parent=5 // pred_check
        %p307 = pneg %p306
      $region50: #{tpu_custom_call.1} parent=5 // pred_check_branch
        %309 = sbr.rel (%p307) target = $region52
      $region51: #{tpu_custom_call.1} parent=5 // pred_region
        %s310 = ssub.s32 %s15, 2
        // Predicated region
        $region53: #{tpu_custom_call.1} parent=51 // pred_check
          %p311 = pneg %p122
        $region54: #{tpu_custom_call.1} parent=51 // pred_check_branch
          %313 = sbr.rel (%p311) target = $region56
        $region55: #{tpu_custom_call.1} parent=51 // pred_region
          %p314 = scmp.lt.s32.totalorder %s21, 2
          %s315 = scalar_select %p314, %s21, 2
          %s316 = smul.addr %s315, 8
          %s317 = scalar_lea.vmem %s3, %s316
        $region56: #{tpu_custom_call.1} parent=51 // pred_fallthru
          _
      $region52: #{tpu_custom_call.1} parent=5 // pred_fallthru
        _
    $region6: #{tpu_custom_call.1} parent=1 // loop_footer
      %s19 = sadd.s32 1, %s15
    $region7: #{tpu_custom_call.1} parent=1 // loop_footer_branch
      %14 = sbr.rel target = $region3
    $region8: #{tpu_custom_call.1} parent=1 // loop_exit
      _
    %318 = vsyncpa [#allocation3], 1
    %s319 = scalar_lea.sflag [#allocation3], 1
    %320 = vsyncpa %s319, 1
    %321 = vsyncpa [#allocation5], 1
    %s322 = scalar_lea.sflag [#allocation5], 1
    %323 = vsyncpa %s322, 1

</llo_original>
